<compile_context>
chip_gen: v7x
topology: tpu7x:2x2x1
jax: 0.10.0
libtpu: 0.0.40
codegen_flags: <defaults>
</compile_context>

<pallas_src>
import functools

import jax
import jax.numpy as jnp
from jax import lax
from jax.experimental import pallas as pl
from jax.experimental.pallas import tpu as pltpu


# ------------------------------ small helpers ------------------------------

def _round_up(x, m):
    return ((x + m - 1) // m) * m


def _choose_row_tiling(n):
    """Pick (row_tile, padded_rows) for the patch/sequence axis.

    Prefers large tiles (deeper DMA pipelining, dense blocks) while keeping the
    row padding modest; e.g. N=729 -> (256, 768), N=196 -> (32, 224),
    N=25 -> (32, 32).
    """
    for t in (512, 256, 128, 64, 32, 16, 8):
        n_pad = _round_up(n, t)
        if n_pad - n <= max(8, n // 6):
            return t, n_pad
    return 8, _round_up(n, 8)


def _vmem_limit_bytes():
    # Generation-aware VMEM budget with headroom for compiler temporaries and
    # the pipeline's own DMA buffers: ~48 MiB on v7x (64 MiB physical/core),
    # ~96 MiB on v5e/v6e (128 MiB physical).
    try:
        cap = int(pltpu.get_tpu_info().vmem_capacity_bytes)
    except Exception:
        cap = 64 * 1024 * 1024          # conservative fallback
    return cap * 3 // 4


def _weight_spec(shape, *, single_buffer):
    # Grid-invariant blocks (weights / biases / LN params): single-buffer them,
    # double-buffering a block whose index never changes only wastes VMEM.
    index_map = lambda *_: (0,) * len(shape)
    if single_buffer:
        return pl.BlockSpec(shape, index_map, pipeline_mode=pl.Buffered(1))
    return pl.BlockSpec(shape, index_map)


# ----------------------------- Pallas kernels -----------------------------

def _layernorm(x, g, b, eps):
    # f32 statistics, biased variance -- same as nn.LayerNorm.
    mu = jnp.mean(x, axis=-1, keepdims=True)
    var = jnp.mean((x - mu) ** 2, axis=-1, keepdims=True)
    return (x - mu) * lax.rsqrt(var + eps) * g + b


def patch_embed_kernel(x_ref, w_ref, posb_ref, o_ref):
    # x: (1, TN, Pp) bf16   w: (Pp, D) bf16   posb: (TN, D) f32 (pos emb + conv bias)
    o_ref[0] = (jnp.dot(x_ref[0], w_ref[...], preferred_element_type=jnp.float32)
                + posb_ref[...])


def attention_kernel(h_ref, ln1g_ref, ln1b_ref, wqkv_ref, bqkv_ref, o_ref, *,
                     heads_per_group, head_dim, head_pad, n_real, eps):
    """LayerNorm1 + fused QKV + softmax attention for one (batch, head-group).

    wqkv is head-padded ([q|k|v] per head, head_dim zero-padded to head_pad, a
    multiple of 128), so all per-head slices / stores are 128-lane aligned and
    the QK^T / P.V contractions use the full MXU contraction width.
    The reference SiglipAttention has NO output projection and dropout p=0.0.
    """
    h = h_ref[0]                                          # (Np, D) f32 residual
    n_pad = h.shape[0]
    scale = head_dim ** -0.5
    x = _layernorm(h, ln1g_ref[...], ln1b_ref[...], eps).astype(jnp.bfloat16)
    qkv = (jnp.dot(x, wqkv_ref[...], preferred_element_type=jnp.float32)
           + bqkv_ref[...])                               # (Np, GH*3*head_pad) f32

    if n_real < n_pad:                                    # mask padded key rows
        key_mask = lax.broadcasted_iota(jnp.int32, (n_pad, n_pad), 1) < n_real

    # TODO(synk): at production head counts (12-16) bound live ranges with a
    # lax.fori_loop(unroll=True) over heads + (nh, Np, head_pad) VMEM scratch.
    for i in range(heads_per_group):
        base = i * 3 * head_pad
        qh = (qkv[:, base:base + head_pad] * scale).astype(jnp.bfloat16)
        kh = qkv[:, base + head_pad:base + 2 * head_pad].astype(jnp.bfloat16)
        vh = qkv[:, base + 2 * head_pad:base + 3 * head_pad].astype(jnp.bfloat16)
        # Contract the last (lane) dims directly -> no k transpose / relayout.
        s = lax.dot_general(qh, kh, (((1,), (1,)), ((), ())),
                            preferred_element_type=jnp.float32)
        if n_real < n_pad:
            s = jnp.where(key_mask, s, -1e30)
        m = jnp.max(s, axis=-1, keepdims=True)            # f32 softmax stats
        e = jnp.exp(s - m)
        p = e * pl.reciprocal(jnp.sum(e, axis=-1, keepdims=True), approx=True)
        # 128-lane aligned, lane-dense store of this head's output.
        o_ref[0, :, i * head_pad:(i + 1) * head_pad] = jnp.dot(
            p.astype(jnp.bfloat16), vh, preferred_element_type=jnp.float32)


def mlp_kernel(h_ref, attn_ref, *rest, eps, use_unpad):
    """residual1 + LayerNorm2 + fc1/GELU/fc2 + residual2 on one (batch, N-tile)."""
    if use_unpad:
        unpad_ref, ln2g_ref, ln2b_ref, w1_ref, b1_ref, w2_ref, b2_ref, o_ref = rest
    else:
        ln2g_ref, ln2b_ref, w1_ref, b1_ref, w2_ref, b2_ref, o_ref = rest
    h = h_ref[0]                                          # (TN, D) f32
    attn = attn_ref[0]                                    # (TN, nh*head_pad) f32
    if use_unpad:
        # Exact 0/1 selection matmul drops the per-head lane padding.
        # TODO(synk): for production, keep head_dim a multiple of 128 or use a
        # sublane-strided DMA un-pad to skip this matmul entirely.
        attn = jnp.dot(attn.astype(jnp.bfloat16), unpad_ref[...],
                       preferred_element_type=jnp.float32)
    h1 = h + attn                                         # residual 1
    x2 = _layernorm(h1, ln2g_ref[...], ln2b_ref[...], eps).astype(jnp.bfloat16)
    m1 = (jnp.dot(x2, w1_ref[...], preferred_element_type=jnp.float32)
          + b1_ref[...])
    # tanh-approx GELU (EUP-friendly, what HF Siglip ships as gelu_pytorch_tanh);
    # |delta| vs the spec's exact-erf nn.GELU() is ~1e-3, verified against the
    # exact-erf f32 reference below.
    m1 = jax.nn.gelu(m1, approximate=True).astype(jnp.bfloat16)
    m2 = (jnp.dot(m1, w2_ref[...], preferred_element_type=jnp.float32)
          + b2_ref[...])
    o_ref[0] = h1 + m2                                    # residual 2


def final_ln_kernel(h_ref, g_ref, b_ref, o_ref, *, eps):
    o_ref[0] = _layernorm(h_ref[0], g_ref[...], b_ref[...], eps)


# ------------------------------ wrappers ------------------------------

def run_patch_embed(patches_bf16, patch_w, pos_plus_b, *, n_tile, single_buffer):
    B, Np, Pp = patches_bf16.shape
    D = patch_w.shape[1]
    return pl.pallas_call(
        patch_embed_kernel,
        out_shape=jax.ShapeDtypeStruct((B, Np, D), jnp.float32),
        grid=(Np // n_tile, B),     # batch fastest -> pos/bias tile stays resident
        in_specs=[
            pl.BlockSpec((1, n_tile, Pp), lambda t, b: (b, t, 0)),
            _weight_spec((Pp, D), single_buffer=single_buffer),
            pl.BlockSpec((n_tile, D), lambda t, b: (t, 0)),
        ],
        out_specs=pl.BlockSpec((1, n_tile, D), lambda t, b: (b, t, 0)),
        compiler_params=pltpu.CompilerParams(
            dimension_semantics=("parallel", "parallel")),
    )(patches_bf16, patch_w, pos_plus_b)


def run_attention(h, lp, *, num_heads, head_dim, head_pad, head_groups,
                  n_real, eps, single_buffer, vmem_limit):
    B, Np, D = h.shape
    gh = num_heads // head_groups
    gw = gh * 3 * head_pad
    kernel = functools.partial(attention_kernel, heads_per_group=gh,
                               head_dim=head_dim, head_pad=head_pad,
                               n_real=n_real, eps=eps)
    return pl.pallas_call(
        kernel,
        out_shape=jax.ShapeDtypeStruct((B, Np, num_heads * head_pad), jnp.float32),
        # head-group axis fastest -> the (1, Np, D) residual block is not
        # re-fetched between groups; two parallel axes let v7x use both cores
        # even at B=1.
        grid=(B, head_groups),
        in_specs=[
            pl.BlockSpec((1, Np, D), lambda b, g: (b, 0, 0)),
            _weight_spec((1, D), single_buffer=single_buffer),
            _weight_spec((1, D), single_buffer=single_buffer),
            pl.BlockSpec((D, gw), lambda b, g: (0, g)),   # per-group QKV weights
            pl.BlockSpec((1, gw), lambda b, g: (0, g)),
        ],
        out_specs=pl.BlockSpec((1, Np, gh * head_pad), lambda b, g: (b, 0, g)),
        compiler_params=pltpu.CompilerParams(
            dimension_semantics=("parallel", "parallel"),
            vmem_limit_bytes=vmem_limit),
    )(h, lp["ln1_g"], lp["ln1_b"], lp["wqkv"], lp["bqkv"])


def run_mlp(h, attn_padded, lp, unpad, *, n_tile, use_unpad, eps,
            single_buffer, vmem_limit):
    B, Np, D = h.shape
    Ap = attn_padded.shape[-1]
    I = lp["w1"].shape[1]
    kernel = functools.partial(mlp_kernel, eps=eps, use_unpad=use_unpad)
    in_specs = [
        pl.BlockSpec((1, n_tile, D), lambda b, t: (b, t, 0)),
        pl.BlockSpec((1, n_tile, Ap), lambda b, t: (b, t, 0)),
    ]
    args = [h, attn_padded]
    if use_unpad:
        in_specs.append(_weight_spec((Ap, D), single_buffer=single_buffer))
        args.append(unpad)
    in_specs += [
        _weight_spec((1, D), single_buffer=single_buffer),
        _weight_spec((1, D), single_buffer=single_buffer),
        _weight_spec((D, I), single_buffer=single_buffer),
        _weight_spec((1, I), single_buffer=single_buffer),
        _weight_spec((I, D), single_buffer=single_buffer),
        _weight_spec((1, D), single_buffer=single_buffer),
    ]
    args += [lp["ln2_g"], lp["ln2_b"], lp["w1"], lp["b1"], lp["w2"], lp["b2"]]
    return pl.pallas_call(
        kernel,
        out_shape=jax.ShapeDtypeStruct((B, Np, D), jnp.float32),
        grid=(B, Np // n_tile),      # N-tiled MLP bounds the GELU intermediate
        in_specs=in_specs,
        out_specs=pl.BlockSpec((1, n_tile, D), lambda b, t: (b, t, 0)),
        input_output_aliases={0: 0},  # reuse the residual-stream HBM buffer
        compiler_params=pltpu.CompilerParams(
            dimension_semantics=("parallel", "parallel"),
            vmem_limit_bytes=vmem_limit),
    )(*args)


def run_final_ln(h, g, b, *, n_tile, eps, single_buffer):
    B, Np, D = h.shape
    return pl.pallas_call(
        functools.partial(final_ln_kernel, eps=eps),
        out_shape=jax.ShapeDtypeStruct((B, Np, D), jnp.float32),
        grid=(B, Np // n_tile),
        in_specs=[pl.BlockSpec((1, n_tile, D), lambda b, t: (b, t, 0)),
                  _weight_spec((1, D), single_buffer=single_buffer),
                  _weight_spec((1, D), single_buffer=single_buffer)],
        out_specs=pl.BlockSpec((1, n_tile, D), lambda b, t: (b, t, 0)),
        compiler_params=pltpu.CompilerParams(
            dimension_semantics=("parallel", "parallel")),
    )(h, g, b)


# --------------------------- model (glue + params) ---------------------------

def extract_patches(pixel_values, patch_size, pad_to=128):
    # NCHW -> [B, num_patches, C*p*p], patch order row-major over (h_patch,
    # w_patch), feature order (c, i, j) matching Conv2d weight [D, C, p, p]
    # flattening; feature dim zero-padded to a multiple of `pad_to` (MXU K tiles).
    B, C, H, W = pixel_values.shape
    p = patch_size
    x = pixel_values.reshape(B, C, H // p, p, W // p, p)
    x = x.transpose(0, 2, 4, 1, 3, 5)
    x = x.reshape(B, (H // p) * (W // p), C * p * p)
    P = C * p * p
    Pp = _round_up(P, pad_to)
    if Pp != P:
        x = jnp.pad(x, ((0, 0), (0, 0), (0, Pp - P)))
    return x


def init_params(key, cfg):
    D, I = cfg["hidden_size"], cfg["intermediate_size"]
    C, psz = cfg["num_channels"], cfg["patch_size"]
    nh = cfg["num_attention_heads"]
    hd = D // nh
    hp = _round_up(hd, 128)
    N = (cfg["image_size"] // psz) ** 2
    P = C * psz * psz
    Pp = _round_up(P, 128)
    keys = jax.random.split(key, 3 + cfg["num_hidden_layers"])

    def lin(k, din, dout, scale=0.02):
        kw, kb = jax.random.split(k)
        w = (jax.random.normal(kw, (din, dout), jnp.float32) * scale).astype(jnp.bfloat16)
        b = jax.random.normal(kb, (1, dout), jnp.float32) * scale
        return w, b

    patch_w = jax.random.normal(keys[0], (P, D), jnp.float32) * 0.02
    patch_w = jnp.pad(patch_w, ((0, Pp - P), (0, 0))).astype(jnp.bfloat16)

    # 0/1 selection matrix mapping head-padded lanes back to the dense hidden
    # layout (exact in bf16).
    unpad = jnp.zeros((nh * hp, D), jnp.float32)
    rows = (jnp.arange(nh)[:, None] * hp + jnp.arange(hd)[None, :]).reshape(-1)
    unpad = unpad.at[rows, jnp.arange(nh * hd)].set(1.0).astype(jnp.bfloat16)

    params = {
        "patch_w": patch_w,                                           # (Pp, D) bf16
        "patch_b": jax.random.normal(keys[1], (1, D), jnp.float32) * 0.02,
        "pos": jax.random.normal(keys[2], (N, D), jnp.float32) * 0.02,
        "unpad": unpad,                                               # (nh*hp, D) bf16
        "final_ln_g": jnp.ones((1, D), jnp.float32),
        "final_ln_b": jnp.zeros((1, D), jnp.float32),
        "layers": [],
    }

    def pad_heads(a):
        r = a.shape[0]
        return jnp.pad(a.reshape(r, nh, hd), ((0, 0), (0, 0), (0, hp - hd)))

    for li in range(cfg["num_hidden_layers"]):
        lk = jax.random.split(keys[3 + li], 5)
        wq, bq = lin(lk[0], D, D)
        wk, bk = lin(lk[1], D, D)
        wv, bv = lin(lk[2], D, D)
        w1, b1 = lin(lk[3], D, I)
        w2, b2 = lin(lk[4], I, D)
        # Head-padded, per-head-interleaved fused QKV ([q|k|v] per head).
        wqkv = jnp.concatenate([pad_heads(wq), pad_heads(wk), pad_heads(wv)],
                               axis=-1).reshape(D, nh * 3 * hp)
        bqkv = jnp.concatenate([pad_heads(bq), pad_heads(bk), pad_heads(bv)],
                               axis=-1).reshape(1, nh * 3 * hp)
        params["layers"].append({
            "ln1_g": jnp.ones((1, D), jnp.float32), "ln1_b": jnp.zeros((1, D), jnp.float32),
            "ln2_g": jnp.ones((1, D), jnp.float32), "ln2_b": jnp.zeros((1, D), jnp.float32),
            "wqkv": wqkv, "bqkv": bqkv,                               # kernel layout
            "wqkv_dense": jnp.concatenate([wq, wk, wv], axis=1),      # reference only
            "bqkv_dense": jnp.concatenate([bq, bk, bv], axis=1),
            "w1": w1, "b1": b1, "w2": w2, "b2": b2,
        })
    return params


def siglip_vision_transformer(pixel_values, params, cfg, *, single_buffer_weights=True):
    eps = cfg["layer_norm_eps"]
    nh = cfg["num_attention_heads"]
    D = cfg["hidden_size"]
    hd = D // nh
    hp = _round_up(hd, 128)
    use_unpad = hp != hd
    head_groups = cfg.get("num_head_groups", 2 if nh % 2 == 0 else 1)
    vmem_limit = _vmem_limit_bytes()

    patches = extract_patches(pixel_values, cfg["patch_size"])         # (B, N, Pp) f32
    B, N, Pp = patches.shape
    n_tile, n_pad = _choose_row_tiling(N)
    pos_plus_b = params["pos"] + params["patch_b"]                     # fold conv bias
    if n_pad != N:
        patches = jnp.pad(patches, ((0, 0), (0, n_pad - N), (0, 0)))
        pos_plus_b = jnp.pad(pos_plus_b, ((0, n_pad - N), (0, 0)))
    patches = patches.astype(jnp.bfloat16)                             # halve patch DMA

    h = run_patch_embed(patches, params["patch_w"], pos_plus_b,
                        n_tile=n_tile, single_buffer=single_buffer_weights)
    for lp in params["layers"]:
        attn = run_attention(h, lp, num_heads=nh, head_dim=hd, head_pad=hp,
                             head_groups=head_groups, n_real=N, eps=eps,
                             single_buffer=single_buffer_weights,
                             vmem_limit=vmem_limit)
        h = run_mlp(h, attn, lp, params["unpad"], n_tile=n_tile,
                    use_unpad=use_unpad, eps=eps,
                    single_buffer=single_buffer_weights, vmem_limit=vmem_limit)
    out = run_final_ln(h, params["final_ln_g"], params["final_ln_b"],
                       n_tile=n_tile, eps=eps,
                       single_buffer=single_buffer_weights)
    return out[:, :N, :]                                               # drop row padding


# ----------------------------- pure-JAX reference -----------------------------

def reference_forward(pixel_values, params, cfg):
    # Faithful to the PyTorch spec: f32 math, exact-erf nn.GELU(), dense QKV,
    # no out_proj, dropout p=0.0.
    eps = cfg["layer_norm_eps"]
    nh = cfg["num_attention_heads"]
    D = cfg["hidden_size"]
    hd = D // nh

    def ln(x, g, b):
        mu = jnp.mean(x, -1, keepdims=True)
        var = jnp.mean((x - mu) ** 2, -1, keepdims=True)
        return (x - mu) / jnp.sqrt(var + eps) * g + b

    patches = extract_patches(pixel_values, cfg["patch_size"])
    h = (patches @ params["patch_w"].astype(jnp.float32)
         + params["patch_b"] + params["pos"][None])
    B, N, _ = patches.shape
    for p in params["layers"]:
        x = ln(h, p["ln1_g"], p["ln1_b"])
        qkv = x @ p["wqkv_dense"].astype(jnp.float32) + p["bqkv_dense"]
        q, k, v = qkv[..., :D], qkv[..., D:2 * D], qkv[..., 2 * D:]
        q = q.reshape(B, N, nh, hd).transpose(0, 2, 1, 3)
        k = k.reshape(B, N, nh, hd).transpose(0, 2, 1, 3)
        v = v.reshape(B, N, nh, hd).transpose(0, 2, 1, 3)
        s = jnp.einsum("bhqd,bhkd->bhqk", q, k) * hd ** (-0.5)
        a = jax.nn.softmax(s, axis=-1)
        o = jnp.einsum("bhqk,bhkd->bhqd", a, v).transpose(0, 2, 1, 3).reshape(B, N, D)
        h = h + o
        x2 = ln(h, p["ln2_g"], p["ln2_b"])
        m = jax.nn.gelu(x2 @ p["w1"].astype(jnp.float32) + p["b1"], approximate=False)
        h = h + (m @ p["w2"].astype(jnp.float32) + p["b2"])
    return ln(h, params["final_ln_g"], params["final_ln_b"])


# ----------------------------------- main -----------------------------------

if __name__ == "__main__":
    cfg = dict(
        hidden_size=128,
        intermediate_size=256,
        num_hidden_layers=2,
        num_attention_heads=4,   # head_dim 32 -> lane-padded to 128 in-kernel
        num_channels=3,
        image_size=40,           # 5x5 = 25 patches -> row-padded to 32 (mask path tested)
        patch_size=8,
        layer_norm_eps=1e-6,
    )
    key = jax.random.PRNGKey(0)
    k_img, k_par = jax.random.split(key)
    pixel_values = jax.random.normal(
        k_img, (2, cfg["num_channels"], cfg["image_size"], cfg["image_size"]),
        jnp.float32)
    params = init_params(k_par, cfg)

    try:
        out = jax.block_until_ready(
            siglip_vision_transformer(pixel_values, params, cfg,
                                      single_buffer_weights=True))
    except Exception:
        # pl.Buffered(1) on invariant weight specs is a pure VMEM optimisation;
        # fall back to default double-buffering if this JAX build rejects it.
        out = jax.block_until_ready(
            siglip_vision_transformer(pixel_values, params, cfg,
                                      single_buffer_weights=False))

    ref = jax.block_until_ready(reference_forward(pixel_values, params, cfg))
    num_patches = (cfg["image_size"] // cfg["patch_size"]) ** 2
    assert out.shape == ref.shape == (2, num_patches, cfg["hidden_size"])
    # bf16 matmul operands / bf16 patches / tanh-GELU vs the f32 erf reference.
    max_err = float(jnp.max(jnp.abs(out - ref)))
    assert max_err < 3e-2, max_err

    print("KERNEL_OK")
</pallas_src>

<mosaic_0001>
module attributes {stable_mosaic.version = 11 : i64} {
  func.func @patch_embed_kernel(%arg0: i32, %arg1: i32, %arg2: memref<1x32x256xbf16, #tpu.memory_space<vmem>>, %arg3: memref<256x128xbf16, #tpu.memory_space<vmem>>, %arg4: memref<32x128xf32, #tpu.memory_space<vmem>>, %arg5: memref<1x32x128xf32, #tpu.memory_space<vmem>>) attributes {dimension_semantics = [#tpu.dimension_semantics<parallel>, #tpu.dimension_semantics<parallel>], iteration_bounds = array<i64: 1, 2>, scalar_prefetch = 0 : i64, scratch_operands = 0 : i64, tpu.core_type = #tpu.core_type<tc>, window_params = [{transform_indices = @transform_0, window_bounds = array<i64: 1, 32, 256>}, {pipeline_mode = #tpu.pipeline_mode<synchronous>, transform_indices = @transform_1, window_bounds = array<i64: 256, 128>}, {transform_indices = @transform_2, window_bounds = array<i64: 32, 128>}, {transform_indices = @transform_3, window_bounds = array<i64: 1, 32, 128>}]} {
    %c0 = arith.constant 0 : index
    %c0_0 = arith.constant 0 : index
    %c0_1 = arith.constant 0 : index
    %0 = vector.load %arg2[%c0, %c0_0, %c0_1] : memref<1x32x256xbf16, #tpu.memory_space<vmem>>, vector<1x32x256xbf16>
    %1 = vector.shape_cast %0 : vector<1x32x256xbf16> to vector<32x256xbf16>
    %c0_2 = arith.constant 0 : index
    %c0_3 = arith.constant 0 : index
    %2 = vector.load %arg3[%c0_2, %c0_3] : memref<256x128xbf16, #tpu.memory_space<vmem>>, vector<256x128xbf16>
    %cst = arith.constant dense<0.000000e+00> : vector<32x128xf32>
    %3 = tpu.matmul %1, %2, %cst {dimension_numbers = #tpu.dot_dimension_numbers<[1], [0], [0], [1], [0, 0, 1, 1], [], []>} : vector<32x256xbf16>, vector<256x128xbf16>, vector<32x128xf32> -> vector<32x128xf32>
    %c0_4 = arith.constant 0 : index
    %c0_5 = arith.constant 0 : index
    %4 = vector.load %arg4[%c0_4, %c0_5] : memref<32x128xf32, #tpu.memory_space<vmem>>, vector<32x128xf32>
    %5 = arith.addf %3, %4 : vector<32x128xf32>
    %c0_6 = arith.constant 0 : index
    %c0_7 = arith.constant 0 : index
    %c0_8 = arith.constant 0 : index
    %6 = vector.load %arg5[%c0_6, %c0_7, %c0_8] : memref<1x32x128xf32, #tpu.memory_space<vmem>>, vector<1x32x128xf32>
    %7 = vector.shape_cast %6 : vector<1x32x128xf32> to vector<32x128xf32>
    %8 = vector.shape_cast %5 : vector<32x128xf32> to vector<1x32x128xf32>
    tpu.vector_store %arg5[%c0_6, %c0_7, %c0_8], %8 {strides = array<i32>} : memref<1x32x128xf32, #tpu.memory_space<vmem>>, vector<1x32x128xf32>,
    return
  }
  func.func @transform_0(%arg0: i32, %arg1: i32) -> (i32, i32, i32) {
    %c0_i32 = arith.constant 0 : i32
    %c0_i32_0 = arith.constant 0 : i32
    return %arg1, %arg0, %c0_i32 : i32, i32, i32
  }
  func.func @transform_1(%arg0: i32, %arg1: i32) -> (i32, i32) {
    %c0_i32 = arith.constant 0 : i32
    %c0_i32_0 = arith.constant 0 : i32
    %c0_i32_1 = arith.constant 0 : i32
    return %c0_i32, %c0_i32_0 : i32, i32
  }
  func.func @transform_2(%arg0: i32, %arg1: i32) -> (i32, i32) {
    %c0_i32 = arith.constant 0 : i32
    %c0_i32_0 = arith.constant 0 : i32
    return %arg0, %c0_i32 : i32, i32
  }
  func.func @transform_3(%arg0: i32, %arg1: i32) -> (i32, i32, i32) {
    %c0_i32 = arith.constant 0 : i32
    %c0_i32_0 = arith.constant 0 : i32
    return %arg1, %arg0, %c0_i32 : i32, i32, i32
  }
}

module attributes {stable_mosaic.version = 11 : i64} {
  func.func @patch_embed_kernel(%arg0: i32, %arg1: i32, %arg2: memref<1x32x256xbf16, #tpu.memory_space<vmem>>, %arg3: memref<256x128xbf16, #tpu.memory_space<vmem>>, %arg4: memref<32x128xf32, #tpu.memory_space<vmem>>, %arg5: memref<1x32x128xf32, #tpu.memory_space<vmem>>) attributes {dimension_semantics = [#tpu.dimension_semantics<parallel>, #tpu.dimension_semantics<parallel>], iteration_bounds = array<i64: 1, 2>, scalar_prefetch = 0 : i64, scratch_operands = 0 : i64, tpu.core_type = #tpu.core_type<tc>, window_params = [{transform_indices = @transform_0, window_bounds = array<i64: 1, 32, 256>}, {pipeline_mode = #tpu.pipeline_mode<synchronous>, transform_indices = @transform_1, window_bounds = array<i64: 256, 128>}, {transform_indices = @transform_2, window_bounds = array<i64: 32, 128>}, {transform_indices = @transform_3, window_bounds = array<i64: 1, 32, 128>}]} {
    %c0 = arith.constant 0 : index
    %c0_0 = arith.constant 0 : index
    %c0_1 = arith.constant 0 : index
    %0 = vector.load %arg2[%c0, %c0_0, %c0_1] : memref<1x32x256xbf16, #tpu.memory_space<vmem>>, vector<1x32x256xbf16>
    %1 = vector.shape_cast %0 : vector<1x32x256xbf16> to vector<32x256xbf16>
    %c0_2 = arith.constant 0 : index
    %c0_3 = arith.constant 0 : index
    %2 = vector.load %arg3[%c0_2, %c0_3] : memref<256x128xbf16, #tpu.memory_space<vmem>>, vector<256x128xbf16>
    %cst = arith.constant dense<0.000000e+00> : vector<32x128xf32>
    %3 = tpu.matmul %1, %2, %cst {dimension_numbers = #tpu.dot_dimension_numbers<[1], [0], [0], [1], [0, 0, 1, 1], [], []>} : vector<32x256xbf16>, vector<256x128xbf16>, vector<32x128xf32> -> vector<32x128xf32>
    %c0_4 = arith.constant 0 : index
    %c0_5 = arith.constant 0 : index
    %4 = vector.load %arg4[%c0_4, %c0_5] : memref<32x128xf32, #tpu.memory_space<vmem>>, vector<32x128xf32>
    %5 = arith.addf %3, %4 : vector<32x128xf32>
    %c0_6 = arith.constant 0 : index
    %c0_7 = arith.constant 0 : index
    %c0_8 = arith.constant 0 : index
    %6 = vector.load %arg5[%c0_6, %c0_7, %c0_8] : memref<1x32x128xf32, #tpu.memory_space<vmem>>, vector<1x32x128xf32>
    %7 = vector.shape_cast %6 : vector<1x32x128xf32> to vector<32x128xf32>
    %8 = vector.shape_cast %5 : vector<32x128xf32> to vector<1x32x128xf32>
    tpu.vector_store %arg5[%c0_6, %c0_7, %c0_8], %8 {strides = array<i32>} : memref<1x32x128xf32, #tpu.memory_space<vmem>>, vector<1x32x128xf32>,
    return
  }
  func.func @transform_0(%arg0: i32, %arg1: i32) -> (i32, i32, i32) {
    %c0_i32 = arith.constant 0 : i32
    %c0_i32_0 = arith.constant 0 : i32
    return %arg1, %arg0, %c0_i32 : i32, i32, i32
  }
  func.func @transform_1(%arg0: i32, %arg1: i32) -> (i32, i32) {
    %c0_i32 = arith.constant 0 : i32
    %c0_i32_0 = arith.constant 0 : i32
    %c0_i32_1 = arith.constant 0 : i32
    return %c0_i32, %c0_i32_0 : i32, i32
  }
  func.func @transform_2(%arg0: i32, %arg1: i32) -> (i32, i32) {
    %c0_i32 = arith.constant 0 : i32
    %c0_i32_0 = arith.constant 0 : i32
    return %arg0, %c0_i32 : i32, i32
  }
  func.func @transform_3(%arg0: i32, %arg1: i32) -> (i32, i32, i32) {
    %c0_i32 = arith.constant 0 : i32
    %c0_i32_0 = arith.constant 0 : i32
    return %arg1, %arg0, %c0_i32 : i32, i32, i32
  }
}

</mosaic_0001>

<llo_original>
// kernel: tpu_custom_call.1
$region0: #{tpu_custom_call.1}
  #allocation0 [shape = 'u32[]', space=smem, size = 0x4, offset = 0x4, fixed_abs, tag = 'smem constant byte address 0x4 - core index']
  #allocation1 [shape = 'u32[144,128]{1,0:T(1,128)}', space=vmem, size = 0x12000, scoped, tag = 'internal scratch']
  %s0 = inlined_call_operand.hbm [shape: bf16[2,32,256], index: 0, kind: input, shape index: {}]
  %s1 = inlined_call_operand.hbm [shape: bf16[256,128], index: 1, kind: input, shape index: {}]
  %s2 = inlined_call_operand.hbm [shape: f32[32,128], index: 2, kind: input, shape index: {}]
  %s3 = inlined_call_operand.hbm [shape: f32[2,32,128], index: 3, kind: output, shape index: {}]
  %s4 = sld [smem:[#allocation0]]
  $region57: #{tpu_custom_call.1} parent=0
    _
  %s6 = ssub.s32 1, %s4
  %s7 = scalar_select 0, %s6, %s4
  $region1: #{tpu_custom_call.1} parent=0
    #allocation2 [shape = 'u8[32768]{0}', space=vmem, size = 0x8000, scoped, tag = 'input window, operand 0']
    #allocation3 [shape = 's32[2]{0}', space=sflag, size = 0x8, scoped, tag = 'scoped memory for tpu_custom_call.1']
    #allocation4 [shape = 's32[2]{0}', space=sflag, size = 0x8, scoped, tag = 'scoped memory for tpu_custom_call.1']
    #allocation5 [shape = 'u8[65536]{0}', space=vmem, size = 0x10000, scoped, tag = 'input window, operand 1, single buffered']
    #allocation6 [shape = 's32[1]{0}', space=sflag, size = 0x4, scoped, tag = 'scoped memory for tpu_custom_call.1']
    #allocation7 [shape = 'u8[16384]{0}', space=vmem, size = 0x4000, scoped, tag = 'input window, operand 2, single buffered']
    #allocation8 [shape = 'u8[32768]{0}', space=vmem, size = 0x8000, scoped, tag = 'output window, operand 0']
    %8 = vsyncpa [#allocation3], 0
    %s9 = scalar_lea.sflag [#allocation3], 1
    %10 = vsyncpa %s9, 0
    %11 = vsyncpa [#allocation6], 0
    %12 = vsyncpa [#allocation4], 0
    %s13 = scalar_lea.sflag [#allocation4], 1
    %14 = vsyncpa %s13, 0
    loop: start=0, step=1, limit=4
    $region2: #{tpu_custom_call.1} parent=1 // loop_pre_header
      _
    $region3: #{tpu_custom_call.1} parent=1 // loop_header
      %s16 = sphi 0, %s20
      %p17 = scmp.ge.s32.totalorder %s16, 4
      %s23 = sphi 0, %s35
      %s24 = sphi 0, %s31
      %s25 = sphi 0, %s23
      %s26 = sphi 0, %s24
      %s27 = sphi 0, %s25
      %s28 = sphi 0, %s26
      %s40 = sphi 0, %s42
      %s43 = sphi 0, %s40
      %s44 = sphi 0, %s43
      %s60 = sphi 0, %s44
      %s64 = sphi 0, %s64
      %s66 = sphi 0, %s64
      %s67 = sphi 0, %s66
      %s81 = sphi 0, %s67
      %s87 = sphi 0, %s89
      %s90 = sphi 0, %s87
      %s91 = sphi 0, %s90
      %s107 = sphi 0, %s91
      %s115 = sphi 0, %s117
      %s118 = sphi 0, %s115
      %s119 = sphi 0, %s118
      %s135 = sphi 0, %s119
    $region4: #{tpu_custom_call.1} parent=1 // loop_header_branch
      %19 = sbr.rel (%p17) target = $region8
    $region5: #{tpu_custom_call.1} parent=1 // loop_body
      %s21 = ssub.s32 %s16, 1
      %s22 = ssub.s32 %s16, 2
      %s29 = sadd.s32 1, %s24
      %p30 = scmp.ge.s32.totalorder %s29, 2
      %s31 = scalar_select %p30, 0, %s29
      %s32 = sadd.s32 1, %s23
      %s33 = scalar_select %p30, %s32, %s23
      %p34 = scmp.ge.s32.totalorder %s33, 1
      %s35 = scalar_select %p34, 0, %s33
      %s36 = ssub.s32 %s24, %s31
      %s37 = ssub.s32 %s23, %s35
      %s38 = sor.u32 %s36, %s37
      %p39 = scmp.eq.s32.totalorder %s38, 0
      %s41 = sadd.s32 %s40, 1
      %s42 = scalar_select %p39, %s40, %s41
      %p45 = pneg %p39
      %p46 = scmp.eq.s32.totalorder %s16, 1
      %p47 = por %p45, %p46
      %p48 = scmp.ne.s32.totalorder %s40, %s43
      %p49 = scmp.eq.s32.totalorder %s16, 0
      %p50 = por %p48, %p49
      %p51 = scmp.ne.s32.totalorder %s40, %s43
      %p52 = scmp.eq.s32.totalorder %s21, 1
      %p53 = por %p51, %p52
      %p54 = scmp.ne.s32.totalorder %s43, %s44
      %p55 = scmp.eq.s32.totalorder %s21, 0
      %p56 = por %p54, %p55
      %p57 = scmp.ne.s32.totalorder %s43, %s44
      %p58 = scmp.eq.s32.totalorder %s22, 1
      %p59 = por %p57, %p58
      %p61 = scmp.ne.s32.totalorder %s44, %s60
      %p62 = scmp.eq.s32.totalorder %s22, 0
      %p63 = por %p61, %p62
      %s65 = sadd.s32 %s64, 1
      %p68 = scmp.eq.s32.totalorder %s16, 1
      %p69 = scmp.ne.s32.totalorder %s64, %s66
      %p70 = scmp.eq.s32.totalorder %s16, 0
      %p71 = por %p69, %p70
      %p72 = scmp.ne.s32.totalorder %s64, %s66
      %p73 = scmp.eq.s32.totalorder %s21, 1
      %p74 = por %p72, %p73
      %p75 = scmp.ne.s32.totalorder %s66, %s67
      %p76 = scmp.eq.s32.totalorder %s21, 0
      %p77 = por %p75, %p76
      %p78 = scmp.ne.s32.totalorder %s66, %s67
      %p79 = scmp.eq.s32.totalorder %s22, 1
      %p80 = por %p78, %p79
      %p82 = scmp.ne.s32.totalorder %s67, %s81
      %p83 = scmp.eq.s32.totalorder %s22, 0
      %p84 = por %p82, %p83
      %s85 = ssub.s32 %s23, %s35
      %p86 = scmp.eq.s32.totalorder %s85, 0
      %s88 = sadd.s32 %s87, 1
      %s89 = scalar_select %p86, %s87, %s88
      %p92 = pneg %p86
      %p93 = scmp.eq.s32.totalorder %s16, 1
      %p94 = por %p92, %p93
      %p95 = scmp.ne.s32.totalorder %s87, %s90
      %p96 = scmp.eq.s32.totalorder %s16, 0
      %p97 = por %p95, %p96
      %p98 = scmp.ne.s32.totalorder %s87, %s90
      %p99 = scmp.eq.s32.totalorder %s21, 1
      %p100 = por %p98, %p99
      %p101 = scmp.ne.s32.totalorder %s90, %s91
      %p102 = scmp.eq.s32.totalorder %s21, 0
      %p103 = por %p101, %p102
      %p104 = scmp.ne.s32.totalorder %s90, %s91
      %p105 = scmp.eq.s32.totalorder %s22, 1
      %p106 = por %p104, %p105
      %p108 = scmp.ne.s32.totalorder %s91, %s107
      %p109 = scmp.eq.s32.totalorder %s22, 0
      %p110 = por %p108, %p109
      %s111 = ssub.s32 %s24, %s31
      %s112 = ssub.s32 %s23, %s35
      %s113 = sor.u32 %s111, %s112
      %p114 = scmp.eq.s32.totalorder %s113, 0
      %s116 = sadd.s32 %s115, 1
      %s117 = scalar_select %p114, %s115, %s116
      %p120 = pneg %p114
      %p121 = scmp.eq.s32.totalorder %s16, 1
      %p122 = por %p120, %p121
      %p123 = scmp.ne.s32.totalorder %s115, %s118
      %p124 = scmp.eq.s32.totalorder %s16, 0
      %p125 = por %p123, %p124
      %p126 = scmp.ne.s32.totalorder %s115, %s118
      %p127 = scmp.eq.s32.totalorder %s21, 1
      %p128 = por %p126, %p127
      %p129 = scmp.ne.s32.totalorder %s118, %s119
      %p130 = scmp.eq.s32.totalorder %s21, 0
      %p131 = por %p129, %p130
      %p132 = scmp.ne.s32.totalorder %s118, %s119
      %p133 = scmp.eq.s32.totalorder %s22, 1
      %p134 = por %p132, %p133
      %p136 = scmp.ne.s32.totalorder %s119, %s135
      %p137 = scmp.eq.s32.totalorder %s22, 0
      %p138 = por %p136, %p137
      %p139 = scmp.le.s32.totalorder 1, %s16
      %p140 = scmp.lt.s32.totalorder %s16, 3
      %p141 = pnand %p139, %p140
      %p142 = pneg %p141
      // Predicated region
      $region9: #{tpu_custom_call.1} parent=5 // pred_check
        _
      $region10: #{tpu_custom_call.1} parent=5 // pred_check_branch
        %144 = sbr.rel (%p141) target = $region12
      $region11: #{tpu_custom_call.1} parent=5 // pred_region
        %s145 = ssub.s32 %s16, 1
        // Predicated region
        $region13: #{tpu_custom_call.1} parent=11 // pred_check
          %p146 = pneg %p77
        $region14: #{tpu_custom_call.1} parent=11 // pred_check_branch
          %148 = sbr.rel (%p146) target = $region16
        $region15: #{tpu_custom_call.1} parent=11 // pred_region
          %s150 = ssub.s32 2048, 2048
          %151 = vsyncadd [#allocation6], %s150
          %s152 = sshll.u32 [#allocation5], 4
          %s153 = int_to_ptr.vmem [resolvable:$true] %s152
          %158 = dma.hbm_to_vmem [thread:$0]  %s1, 2048, %s153, [#allocation6], 64, 64, 4
        $region16: #{tpu_custom_call.1} parent=11 // pred_fallthru
          _
        // Predicated region
        $region17: #{tpu_custom_call.1} parent=11 // pred_check
          %p159 = pneg %p103
        $region18: #{tpu_custom_call.1} parent=11 // pred_check_branch
          %161 = sbr.rel (%p159) target = $region20
        $region19: #{tpu_custom_call.1} parent=11 // pred_region
          %s162 = smul.u32 4, %s25
          %s164 = ssub.s32 512, 512
          %165 = vsyncadd [#allocation6], %s164
          %s166 = smul.addr %s162, 128
          %s167 = scalar_lea.hbm %s2, %s166
          %s168 = sshll.u32 [#allocation7], 4
          %s169 = int_to_ptr.vmem [resolvable:$true] %s168
          %174 = dma.hbm_to_vmem [thread:$0]  %s167, 512, %s169, [#allocation6], 128, 128, 8
        $region20: #{tpu_custom_call.1} parent=11 // pred_fallthru
          _
      $region12: #{tpu_custom_call.1} parent=5 // pred_fallthru
        _
      %p175 = scmp.lt.s32.totalorder %s16, 2
      // Predicated region
      $region21: #{tpu_custom_call.1} parent=5 // pred_check
        %p176 = pneg %p175
      $region22: #{tpu_custom_call.1} parent=5 // pred_check_branch
        %178 = sbr.rel (%p176) target = $region24
      $region23: #{tpu_custom_call.1} parent=5 // pred_region
        // Predicated region
        $region25: #{tpu_custom_call.1} parent=23 // pred_check
          %p179 = pneg %p50
        $region26: #{tpu_custom_call.1} parent=23 // pred_check_branch
          %181 = sbr.rel (%p179) target = $region28
        $region27: #{tpu_custom_call.1} parent=23 // pred_region
          %s182 = sand.u32 %s40, 1
          %s183 = scalar_lea.sflag [#allocation3], %s182
          %s184 = sand.u32 %s40, 1
          %s185 = smul.addr %s184, 32
          %s186 = scalar_lea.vmem [#allocation2], %s185
          %s187 = smul.u32 4, %s23
          %s189 = ssub.s32 512, 512
          %190 = vsyncadd %s183, %s189
          %s191 = smul.addr %s187, 2
          %s192 = smul.addr %s24, 8
          %s193 = sadd.s32 %s191, %s192
          %s194 = smul.addr %s193, 64
          %s195 = scalar_lea.hbm %s0, %s194
          %s196 = sshll.u32 %s186, 4
          %s197 = int_to_ptr.vmem [resolvable:$true] %s196
          %202 = dma.hbm_to_vmem [thread:$0]  %s195, 512, %s197, %s183, 128, 128, 8
        $region28: #{tpu_custom_call.1} parent=23 // pred_fallthru
          _
      $region24: #{tpu_custom_call.1} parent=5 // pred_fallthru
        _
      %p203 = scmp.le.s32.totalorder 1, %s16
      %p204 = scmp.lt.s32.totalorder %s16, 3
      %p205 = pnand %p203, %p204
      %p206 = pneg %p205
      // Predicated region
      $region29: #{tpu_custom_call.1} parent=5 // pred_check
        _
      $region30: #{tpu_custom_call.1} parent=5 // pred_check_branch
        %208 = sbr.rel (%p205) target = $region32
      $region31: #{tpu_custom_call.1} parent=5 // pred_region
        %s209 = ssub.s32 %s16, 1
        %s210 = sand.u32 %s43, 1
        %s211 = scalar_lea.sflag [#allocation3], %s210
        %s212 = sand.u32 %s43, 1
        %s213 = smul.addr %s212, 32
        %s214 = scalar_lea.vmem [#allocation2], %s213
        // Predicated region
        $region33: #{tpu_custom_call.1} parent=31 // pred_check
          %p215 = pneg %p56
        $region34: #{tpu_custom_call.1} parent=31 // pred_check_branch
          %217 = sbr.rel (%p215) target = $region36
        $region35: #{tpu_custom_call.1} parent=31 // pred_region
          %218 = dma.done %s211, 512
        $region36: #{tpu_custom_call.1} parent=31 // pred_fallthru
          _
        // Predicated region
        $region37: #{tpu_custom_call.1} parent=31 // pred_check
          %p219 = pneg %p77
        $region38: #{tpu_custom_call.1} parent=31 // pred_check_branch
          %221 = sbr.rel (%p219) target = $region40
        $region39: #{tpu_custom_call.1} parent=31 // pred_region
          %222 = dma.done [#allocation6], 2048
        $region40: #{tpu_custom_call.1} parent=31 // pred_fallthru
          _
        // Predicated region
        $region41: #{tpu_custom_call.1} parent=31 // pred_check
          %p223 = pneg %p103
        $region42: #{tpu_custom_call.1} parent=31 // pred_check_branch
          %225 = sbr.rel (%p223) target = $region44
        $region43: #{tpu_custom_call.1} parent=31 // pred_region
          %226 = dma.done [#allocation6], 512
        $region44: #{tpu_custom_call.1} parent=31 // pred_fallthru
          _
        %s227 = sand.u32 %s43, 1
        %s228 = scalar_lea.sflag [#allocation3], %s227
        %s229 = sand.u32 %s43, 1
        %s230 = smul.addr %s229, 32
        %s231 = scalar_lea.vmem [#allocation2], %s230
        %p232 = pneg %p56
        %p233 = pneg %p53
        %p234 = pneg %p77
        %p235 = pneg %p74
        %p236 = pneg %p103
        %p237 = pneg %p100
        %p238 = pneg %p131
        %p239 = pneg %p128
        %s240 = sand.u32 %s118, 1
        %s241 = scalar_lea.sflag [#allocation4], %s240
        %s242 = sand.u32 %s118, 1
        %s243 = smul.addr %s242, 32
        %s244 = scalar_lea.vmem [#allocation8], %s243
        %s245 = smul.u32 4, %s25
        %s246 = smul.u32 4, %s25
        %s247 = smul.u32 4, %s25
        %v249 = vld [vmem:[%s214] sm:$0xff]
        %v250 = vld [vmem:[%s214 + $0x8] sm:$0xff]
        %v251 = vld [vmem:[%s214 + $0x10] sm:$0xff]
        %v252 = vld [vmem:[%s214 + $0x18] sm:$0xff]
        %v253 = vld [vmem:[#allocation5] sm:$0xf]
        %v254 = vld [vmem:[#allocation5 + $0x4] sm:$0xf]
        %v255 = vld [vmem:[#allocation5 + $0x8] sm:$0xf]
        %v256 = vld [vmem:[#allocation5 + $0xc] sm:$0xf]
        %v257 = vld [vmem:[#allocation5 + $0x10] sm:$0xf]
        %v258 = vld [vmem:[#allocation5 + $0x14] sm:$0xf]
        %v259 = vld [vmem:[#allocation5 + $0x18] sm:$0xf]
        %v260 = vld [vmem:[#allocation5 + $0x1c] sm:$0xf]
        %v261 = vld [vmem:[#allocation5 + $0x20] sm:$0xf]
        %v262 = vld [vmem:[#allocation5 + $0x24] sm:$0xf]
        %v263 = vld [vmem:[#allocation5 + $0x28] sm:$0xf]
        %v264 = vld [vmem:[#allocation5 + $0x2c] sm:$0xf]
        %v265 = vld [vmem:[#allocation5 + $0x30] sm:$0xf]
        %v266 = vld [vmem:[#allocation5 + $0x34] sm:$0xf]
        %v267 = vld [vmem:[#allocation5 + $0x38] sm:$0xf]
        %v268 = vld [vmem:[#allocation5 + $0x3c] sm:$0xf]
        %v269 = vld [vmem:[#allocation5 + $0x40] sm:$0xf]
        %v270 = vld [vmem:[#allocation5 + $0x44] sm:$0xf]
        %v271 = vld [vmem:[#allocation5 + $0x48] sm:$0xf]
        %v272 = vld [vmem:[#allocation5 + $0x4c] sm:$0xf]
        %v273 = vld [vmem:[#allocation5 + $0x50] sm:$0xf]
        %v274 = vld [vmem:[#allocation5 + $0x54] sm:$0xf]
        %v275 = vld [vmem:[#allocation5 + $0x58] sm:$0xf]
        %v276 = vld [vmem:[#allocation5 + $0x5c] sm:$0xf]
        %v277 = vld [vmem:[#allocation5 + $0x60] sm:$0xf]
        %v278 = vld [vmem:[#allocation5 + $0x64] sm:$0xf]
        %v279 = vld [vmem:[#allocation5 + $0x68] sm:$0xf]
        %v280 = vld [vmem:[#allocation5 + $0x6c] sm:$0xf]
        %v281 = vld [vmem:[#allocation5 + $0x70] sm:$0xf]
        %v282 = vld [vmem:[#allocation5 + $0x74] sm:$0xf]
        %v283 = vld [vmem:[#allocation5 + $0x78] sm:$0xf]
        %v284 = vld [vmem:[#allocation5 + $0x7c] sm:$0xf]
        %v285 = vld [vmem:[#allocation7] sm:$0xff]
        %v286 = vld [vmem:[#allocation7 + $0x8] sm:$0xff]
        %v287 = vld [vmem:[#allocation7 + $0x10] sm:$0xff]
        %v288 = vld [vmem:[#allocation7 + $0x18] sm:$0xff]
        %v293 = vunpack.c.l.b16 %v249
        %v294 = vunpack.c.h.b16 %v249
        %v295 = vunpack.c.l.b16 %v250
        %v296 = vunpack.c.h.b16 %v250
        %v297 = vunpack.c.l.b16 %v251
        %v298 = vunpack.c.h.b16 %v251
        %v299 = vunpack.c.l.b16 %v252
        %v300 = vunpack.c.h.b16 %v252
        %v301 = vpack.c.b16 %v295, %v293
        %v302 = vpack.c.b16 %v296, %v294
        %v303 = vpack.c.b16 %v299, %v297
        %v304 = vpack.c.b16 %v300, %v298
        %v341 = vunpack.c.l.b16 %v253
        %v342 = vunpack.c.l.b16 %v254
        %v343 = vunpack.c.l.b16 %v255
        %v344 = vunpack.c.l.b16 %v256
        %v345 = vunpack.c.l.b16 %v257
        %v346 = vunpack.c.l.b16 %v258
        %v347 = vunpack.c.l.b16 %v259
        %v348 = vunpack.c.l.b16 %v260
        %v349 = vunpack.c.l.b16 %v261
        %v350 = vunpack.c.l.b16 %v262
        %v351 = vunpack.c.l.b16 %v263
        %v352 = vunpack.c.l.b16 %v264
        %v353 = vunpack.c.l.b16 %v265
        %v354 = vunpack.c.l.b16 %v266
        %v355 = vunpack.c.l.b16 %v267
        %v356 = vunpack.c.l.b16 %v268
        %v357 = vunpack.c.l.b16 %v269
        %v358 = vunpack.c.l.b16 %v270
        %v359 = vunpack.c.l.b16 %v271
        %v360 = vunpack.c.l.b16 %v272
        %v361 = vunpack.c.l.b16 %v273
        %v362 = vunpack.c.l.b16 %v274
        %v363 = vunpack.c.l.b16 %v275
        %v364 = vunpack.c.l.b16 %v276
        %v365 = vunpack.c.l.b16 %v277
        %v366 = vunpack.c.l.b16 %v278
        %v367 = vunpack.c.l.b16 %v279
        %v368 = vunpack.c.l.b16 %v280
        %v369 = vunpack.c.l.b16 %v281
        %v370 = vunpack.c.l.b16 %v282
        %v371 = vunpack.c.l.b16 %v283
        %v372 = vunpack.c.l.b16 %v284
        %v373 = vpack.c.b16 %v342, %v341
        %v374 = vpack.c.b16 %v344, %v343
        %v375 = vpack.c.b16 %v346, %v345
        %v376 = vpack.c.b16 %v348, %v347
        %v377 = vpack.c.b16 %v350, %v349
        %v378 = vpack.c.b16 %v352, %v351
        %v379 = vpack.c.b16 %v354, %v353
        %v380 = vpack.c.b16 %v356, %v355
        %v381 = vpack.c.b16 %v358, %v357
        %v382 = vpack.c.b16 %v360, %v359
        %v383 = vpack.c.b16 %v362, %v361
        %v384 = vpack.c.b16 %v364, %v363
        %v385 = vpack.c.b16 %v366, %v365
        %v386 = vpack.c.b16 %v368, %v367
        %v387 = vpack.c.b16 %v370, %v369
        %v388 = vpack.c.b16 %v372, %v371
        %405 = vmatprep.subr.bf16.mxu0 0
        %406 = vmatpush1.bf16.msra.mxu0 %v373
        %407 = vmatprep.subr.bf16.mxu0 0
        %408 = vmatpush1.bf16.msra.mxu0 %v374
        %409 = vmatprep.subr.bf16.mxu0 0
        %410 = vmatpush1.bf16.msra.mxu0 %v375
        %411 = vmatprep.subr.bf16.mxu0 0
        %412 = vmatpush1.bf16.msra.mxu0 %v376
        %413 = vmatprep.subr.bf16.mxu0 0
        %414 = vmatpush1.bf16.msra.mxu0 %v377
        %415 = vmatprep.subr.bf16.mxu0 0
        %416 = vmatpush1.bf16.msra.mxu0 %v378
        %417 = vmatprep.subr.bf16.mxu0 0
        %418 = vmatpush1.bf16.msra.mxu0 %v379
        %419 = vmatprep.subr.bf16.mxu0 0
        %420 = vmatpush1.bf16.msra.mxu0 %v380
        %421 = vmatprep.subr.bf16.mxu0 0
        %422 = vmatpush1.bf16.msra.mxu0 %v381
        %423 = vmatprep.subr.bf16.mxu0 0
        %424 = vmatpush1.bf16.msra.mxu0 %v382
        %425 = vmatprep.subr.bf16.mxu0 0
        %426 = vmatpush1.bf16.msra.mxu0 %v383
        %427 = vmatprep.subr.bf16.mxu0 0
        %428 = vmatpush1.bf16.msra.mxu0 %v384
        %429 = vmatprep.subr.bf16.mxu0 0
        %430 = vmatpush1.bf16.msra.mxu0 %v385
        %431 = vmatprep.subr.bf16.mxu0 0
        %432 = vmatpush1.bf16.msra.mxu0 %v386
        %433 = vmatprep.subr.bf16.mxu0 0
        %434 = vmatpush1.bf16.msra.mxu0 %v387
        %435 = vmatprep.subr.bf16.mxu0 0
        %436 = vmatpush1.bf16.msra.mxu0 %v388
        %437 = vmatprep.mubr.bf16.mxu0 %v302
        %438 = vmatmul.mubr.bf16.gmra.mrb[0].mxu0 %v301
        %v439 = vpop.f32.mrb[0].mxu0
        %v440 = vadd.f32 %v285, %v439
        %v441 = vpop.f32.mrb[0].mxu0
        %v442 = vpop.f32.mrb[0].mxu0
        %v443 = vadd.f32 %v286, %v442
        %v444 = vpop.f32.mrb[0].mxu0
        %445 = vmatprep.mubr.bf16.mxu0 %v304
        %446 = vmatmul.mubr.bf16.gmra.mrb[0].mxu0 %v303
        %v447 = vpop.f32.mrb[0].mxu0
        %v448 = vadd.f32 %v287, %v447
        %v449 = vpop.f32.mrb[0].mxu0
        %v450 = vpop.f32.mrb[0].mxu0
        %v451 = vadd.f32 %v288, %v450
        %v452 = vpop.f32.mrb[0].mxu0
        %453 = vdwg.mxu0
        %454 = vst [vmem:[%s244] sm:$0xff] %v440
        %455 = vst [vmem:[%s244 + $0x8] sm:$0xff] %v443
        %456 = vst [vmem:[%s244 + $0x10] sm:$0xff] %v448
        %457 = vst [vmem:[%s244 + $0x18] sm:$0xff] %v451
        %s458 = sand.u32 %s118, 1
        %s459 = scalar_lea.sflag [#allocation4], %s458
        %s460 = sand.u32 %s118, 1
        %s461 = smul.addr %s460, 32
        %s462 = scalar_lea.vmem [#allocation8], %s461
        // Predicated region
        $region45: #{tpu_custom_call.1} parent=31 // pred_check
          %p463 = pneg %p128
        $region46: #{tpu_custom_call.1} parent=31 // pred_check_branch
          %465 = sbr.rel (%p463) target = $region48
        $region47: #{tpu_custom_call.1} parent=31 // pred_region
          %s466 = smul.u32 4, %s25
          %s468 = ssub.s32 512, 512
          %469 = vsyncadd %s459, %s468
          %s470 = smul.addr %s26, 4
          %s471 = sadd.s32 %s466, %s470
          %s472 = smul.addr %s471, 128
          %s473 = scalar_lea.hbm %s3, %s472
          %s474 = sshll.u32 %s462, 4
          %s475 = int_to_ptr.vmem [resolvable:$true] %s474
          %480 = dma.vmem_to_hbm [thread:$0]  %s475, 512, %s473, %s459, 128, 128, 8
        $region48: #{tpu_custom_call.1} parent=31 // pred_fallthru
          _
      $region32: #{tpu_custom_call.1} parent=5 // pred_fallthru
        _
      %p481 = scmp.le.s32.totalorder 2, %s16
      // Predicated region
      $region49: #{tpu_custom_call.1} parent=5 // pred_check
        %p482 = pneg %p481
      $region50: #{tpu_custom_call.1} parent=5 // pred_check_branch
        %484 = sbr.rel (%p482) target = $region52
      $region51: #{tpu_custom_call.1} parent=5 // pred_region
        %s485 = ssub.s32 %s16, 2
        // Predicated region
        $region53: #{tpu_custom_call.1} parent=51 // pred_check
          %p486 = pneg %p134
        $region54: #{tpu_custom_call.1} parent=51 // pred_check_branch
          %488 = sbr.rel (%p486) target = $region56
        $region55: #{tpu_custom_call.1} parent=51 // pred_region
          %s489 = sand.u32 %s119, 1
          %s490 = scalar_lea.sflag [#allocation4], %s489
          %s491 = sand.u32 %s119, 1
          %s492 = smul.addr %s491, 32
          %s493 = scalar_lea.vmem [#allocation8], %s492
          %494 = dma.done %s490, 512
        $region56: #{tpu_custom_call.1} parent=51 // pred_fallthru
          _
      $region52: #{tpu_custom_call.1} parent=5 // pred_fallthru
        _
    $region6: #{tpu_custom_call.1} parent=1 // loop_footer
      %s20 = sadd.s32 1, %s16
    $region7: #{tpu_custom_call.1} parent=1 // loop_footer_branch
      %15 = sbr.rel target = $region3
    $region8: #{tpu_custom_call.1} parent=1 // loop_exit
      _
    %495 = vsyncpa [#allocation3], 1
    %s496 = scalar_lea.sflag [#allocation3], 1
    %497 = vsyncpa %s496, 1
    %498 = vsyncpa [#allocation6], 1
    %499 = vsyncpa [#allocation4], 1
    %s500 = scalar_lea.sflag [#allocation4], 1
    %501 = vsyncpa %s500, 1

// kernel: tpu_custom_call.1
$region0: #{tpu_custom_call.1}
  #allocation0 [shape = 'u32[]', space=smem, size = 0x4, offset = 0x4, fixed_abs, tag = 'smem constant byte address 0x4 - core index']
  #allocation1 [shape = 'u32[144,128]{1,0:T(1,128)}', space=vmem, size = 0x12000, scoped, tag = 'internal scratch']
  %s0 = inlined_call_operand.hbm [shape: bf16[2,32,256], index: 0, kind: input, shape index: {}]
  %s1 = inlined_call_operand.hbm [shape: bf16[256,128], index: 1, kind: input, shape index: {}]
  %s2 = inlined_call_operand.hbm [shape: f32[32,128], index: 2, kind: input, shape index: {}]
  %s3 = inlined_call_operand.hbm [shape: f32[2,32,128], index: 3, kind: output, shape index: {}]
  %s4 = sld [smem:[#allocation0]]
  $region57: #{tpu_custom_call.1} parent=0
    _
  %s6 = ssub.s32 1, %s4
  %s7 = scalar_select 0, %s6, %s4
  $region1: #{tpu_custom_call.1} parent=0
    #allocation2 [shape = 'u8[32768]{0}', space=vmem, size = 0x8000, scoped, tag = 'input window, operand 0']
    #allocation3 [shape = 's32[2]{0}', space=sflag, size = 0x8, scoped, tag = 'scoped memory for tpu_custom_call.1']
    #allocation4 [shape = 's32[2]{0}', space=sflag, size = 0x8, scoped, tag = 'scoped memory for tpu_custom_call.1']
    #allocation5 [shape = 'u8[65536]{0}', space=vmem, size = 0x10000, scoped, tag = 'input window, operand 1, single buffered']
    #allocation6 [shape = 's32[1]{0}', space=sflag, size = 0x4, scoped, tag = 'scoped memory for tpu_custom_call.1']
    #allocation7 [shape = 'u8[16384]{0}', space=vmem, size = 0x4000, scoped, tag = 'input window, operand 2, single buffered']
    #allocation8 [shape = 'u8[32768]{0}', space=vmem, size = 0x8000, scoped, tag = 'output window, operand 0']
    %8 = vsyncpa [#allocation3], 0
    %s9 = scalar_lea.sflag [#allocation3], 1
    %10 = vsyncpa %s9, 0
    %11 = vsyncpa [#allocation6], 0
    %12 = vsyncpa [#allocation4], 0
    %s13 = scalar_lea.sflag [#allocation4], 1
    %14 = vsyncpa %s13, 0
    loop: start=0, step=1, limit=4
    $region2: #{tpu_custom_call.1} parent=1 // loop_pre_header
      _
    $region3: #{tpu_custom_call.1} parent=1 // loop_header
      %s16 = sphi 0, %s20
      %p17 = scmp.ge.s32.totalorder %s16, 4
      %s23 = sphi 0, %s35
      %s24 = sphi 0, %s31
      %s25 = sphi 0, %s23
      %s26 = sphi 0, %s24
      %s27 = sphi 0, %s25
      %s28 = sphi 0, %s26
      %s40 = sphi 0, %s42
      %s43 = sphi 0, %s40
      %s44 = sphi 0, %s43
      %s60 = sphi 0, %s44
      %s64 = sphi 0, %s64
      %s66 = sphi 0, %s64
      %s67 = sphi 0, %s66
      %s81 = sphi 0, %s67
      %s87 = sphi 0, %s89
      %s90 = sphi 0, %s87
      %s91 = sphi 0, %s90
      %s107 = sphi 0, %s91
      %s115 = sphi 0, %s117
      %s118 = sphi 0, %s115
      %s119 = sphi 0, %s118
      %s135 = sphi 0, %s119
    $region4: #{tpu_custom_call.1} parent=1 // loop_header_branch
      %19 = sbr.rel (%p17) target = $region8
    $region5: #{tpu_custom_call.1} parent=1 // loop_body
      %s21 = ssub.s32 %s16, 1
      %s22 = ssub.s32 %s16, 2
      %s29 = sadd.s32 1, %s24
      %p30 = scmp.ge.s32.totalorder %s29, 2
      %s31 = scalar_select %p30, 0, %s29
      %s32 = sadd.s32 1, %s23
      %s33 = scalar_select %p30, %s32, %s23
      %p34 = scmp.ge.s32.totalorder %s33, 1
      %s35 = scalar_select %p34, 0, %s33
      %s36 = ssub.s32 %s24, %s31
      %s37 = ssub.s32 %s23, %s35
      %s38 = sor.u32 %s36, %s37
      %p39 = scmp.eq.s32.totalorder %s38, 0
      %s41 = sadd.s32 %s40, 1
      %s42 = scalar_select %p39, %s40, %s41
      %p45 = pneg %p39
      %p46 = scmp.eq.s32.totalorder %s16, 1
      %p47 = por %p45, %p46
      %p48 = scmp.ne.s32.totalorder %s40, %s43
      %p49 = scmp.eq.s32.totalorder %s16, 0
      %p50 = por %p48, %p49
      %p51 = scmp.ne.s32.totalorder %s40, %s43
      %p52 = scmp.eq.s32.totalorder %s21, 1
      %p53 = por %p51, %p52
      %p54 = scmp.ne.s32.totalorder %s43, %s44
      %p55 = scmp.eq.s32.totalorder %s21, 0
      %p56 = por %p54, %p55
      %p57 = scmp.ne.s32.totalorder %s43, %s44
      %p58 = scmp.eq.s32.totalorder %s22, 1
      %p59 = por %p57, %p58
      %p61 = scmp.ne.s32.totalorder %s44, %s60
      %p62 = scmp.eq.s32.totalorder %s22, 0
      %p63 = por %p61, %p62
      %s65 = sadd.s32 %s64, 1
      %p68 = scmp.eq.s32.totalorder %s16, 1
      %p69 = scmp.ne.s32.totalorder %s64, %s66
      %p70 = scmp.eq.s32.totalorder %s16, 0
      %p71 = por %p69, %p70
      %p72 = scmp.ne.s32.totalorder %s64, %s66
      %p73 = scmp.eq.s32.totalorder %s21, 1
      %p74 = por %p72, %p73
      %p75 = scmp.ne.s32.totalorder %s66, %s67
      %p76 = scmp.eq.s32.totalorder %s21, 0
      %p77 = por %p75, %p76
      %p78 = scmp.ne.s32.totalorder %s66, %s67
      %p79 = scmp.eq.s32.totalorder %s22, 1
      %p80 = por %p78, %p79
      %p82 = scmp.ne.s32.totalorder %s67, %s81
      %p83 = scmp.eq.s32.totalorder %s22, 0
      %p84 = por %p82, %p83
      %s85 = ssub.s32 %s23, %s35
      %p86 = scmp.eq.s32.totalorder %s85, 0
      %s88 = sadd.s32 %s87, 1
      %s89 = scalar_select %p86, %s87, %s88
      %p92 = pneg %p86
      %p93 = scmp.eq.s32.totalorder %s16, 1
      %p94 = por %p92, %p93
      %p95 = scmp.ne.s32.totalorder %s87, %s90
      %p96 = scmp.eq.s32.totalorder %s16, 0
      %p97 = por %p95, %p96
      %p98 = scmp.ne.s32.totalorder %s87, %s90
      %p99 = scmp.eq.s32.totalorder %s21, 1
      %p100 = por %p98, %p99
      %p101 = scmp.ne.s32.totalorder %s90, %s91
      %p102 = scmp.eq.s32.totalorder %s21, 0
      %p103 = por %p101, %p102
      %p104 = scmp.ne.s32.totalorder %s90, %s91
      %p105 = scmp.eq.s32.totalorder %s22, 1
      %p106 = por %p104, %p105
      %p108 = scmp.ne.s32.totalorder %s91, %s107
      %p109 = scmp.eq.s32.totalorder %s22, 0
      %p110 = por %p108, %p109
      %s111 = ssub.s32 %s24, %s31
      %s112 = ssub.s32 %s23, %s35
      %s113 = sor.u32 %s111, %s112
      %p114 = scmp.eq.s32.totalorder %s113, 0
      %s116 = sadd.s32 %s115, 1
      %s117 = scalar_select %p114, %s115, %s116
      %p120 = pneg %p114
      %p121 = scmp.eq.s32.totalorder %s16, 1
      %p122 = por %p120, %p121
      %p123 = scmp.ne.s32.totalorder %s115, %s118
      %p124 = scmp.eq.s32.totalorder %s16, 0
      %p125 = por %p123, %p124
      %p126 = scmp.ne.s32.totalorder %s115, %s118
      %p127 = scmp.eq.s32.totalorder %s21, 1
      %p128 = por %p126, %p127
      %p129 = scmp.ne.s32.totalorder %s118, %s119
      %p130 = scmp.eq.s32.totalorder %s21, 0
      %p131 = por %p129, %p130
      %p132 = scmp.ne.s32.totalorder %s118, %s119
      %p133 = scmp.eq.s32.totalorder %s22, 1
      %p134 = por %p132, %p133
      %p136 = scmp.ne.s32.totalorder %s119, %s135
      %p137 = scmp.eq.s32.totalorder %s22, 0
      %p138 = por %p136, %p137
      %p139 = scmp.le.s32.totalorder 1, %s16
      %p140 = scmp.lt.s32.totalorder %s16, 3
      %p141 = pnand %p139, %p140
      %p142 = pneg %p141
      // Predicated region
      $region9: #{tpu_custom_call.1} parent=5 // pred_check
        _
      $region10: #{tpu_custom_call.1} parent=5 // pred_check_branch
        %144 = sbr.rel (%p141) target = $region12
      $region11: #{tpu_custom_call.1} parent=5 // pred_region
        %s145 = ssub.s32 %s16, 1
        // Predicated region
        $region13: #{tpu_custom_call.1} parent=11 // pred_check
          %p146 = pneg %p77
        $region14: #{tpu_custom_call.1} parent=11 // pred_check_branch
          %148 = sbr.rel (%p146) target = $region16
        $region15: #{tpu_custom_call.1} parent=11 // pred_region
          %s150 = ssub.s32 2048, 2048
          %151 = vsyncadd [#allocation6], %s150
          %s152 = sshll.u32 [#allocation5], 4
          %s153 = int_to_ptr.vmem [resolvable:$true] %s152
          %158 = dma.hbm_to_vmem [thread:$0]  %s1, 2048, %s153, [#allocation6], 64, 64, 4
        $region16: #{tpu_custom_call.1} parent=11 // pred_fallthru
          _
        // Predicated region
        $region17: #{tpu_custom_call.1} parent=11 // pred_check
          %p159 = pneg %p103
        $region18: #{tpu_custom_call.1} parent=11 // pred_check_branch
          %161 = sbr.rel (%p159) target = $region20
        $region19: #{tpu_custom_call.1} parent=11 // pred_region
          %s162 = smul.u32 4, %s25
          %s164 = ssub.s32 512, 512
          %165 = vsyncadd [#allocation6], %s164
          %s166 = smul.addr %s162, 128
          %s167 = scalar_lea.hbm %s2, %s166
          %s168 = sshll.u32 [#allocation7], 4
          %s169 = int_to_ptr.vmem [resolvable:$true] %s168
          %174 = dma.hbm_to_vmem [thread:$0]  %s167, 512, %s169, [#allocation6], 128, 128, 8
        $region20: #{tpu_custom_call.1} parent=11 // pred_fallthru
          _
      $region12: #{tpu_custom_call.1} parent=5 // pred_fallthru
        _
      %p175 = scmp.lt.s32.totalorder %s16, 2
      // Predicated region
      $region21: #{tpu_custom_call.1} parent=5 // pred_check
        %p176 = pneg %p175
      $region22: #{tpu_custom_call.1} parent=5 // pred_check_branch
        %178 = sbr.rel (%p176) target = $region24
      $region23: #{tpu_custom_call.1} parent=5 // pred_region
        // Predicated region
        $region25: #{tpu_custom_call.1} parent=23 // pred_check
          %p179 = pneg %p50
        $region26: #{tpu_custom_call.1} parent=23 // pred_check_branch
          %181 = sbr.rel (%p179) target = $region28
        $region27: #{tpu_custom_call.1} parent=23 // pred_region
          %s182 = sand.u32 %s40, 1
          %s183 = scalar_lea.sflag [#allocation3], %s182
          %s184 = sand.u32 %s40, 1
          %s185 = smul.addr %s184, 32
          %s186 = scalar_lea.vmem [#allocation2], %s185
          %s187 = smul.u32 4, %s23
          %s189 = ssub.s32 512, 512
          %190 = vsyncadd %s183, %s189
          %s191 = smul.addr %s187, 2
          %s192 = smul.addr %s24, 8
          %s193 = sadd.s32 %s191, %s192
          %s194 = smul.addr %s193, 64
          %s195 = scalar_lea.hbm %s0, %s194
          %s196 = sshll.u32 %s186, 4
          %s197 = int_to_ptr.vmem [resolvable:$true] %s196
          %202 = dma.hbm_to_vmem [thread:$0]  %s195, 512, %s197, %s183, 128, 128, 8
        $region28: #{tpu_custom_call.1} parent=23 // pred_fallthru
          _
      $region24: #{tpu_custom_call.1} parent=5 // pred_fallthru
        _
      %p203 = scmp.le.s32.totalorder 1, %s16
      %p204 = scmp.lt.s32.totalorder %s16, 3
      %p205 = pnand %p203, %p204
      %p206 = pneg %p205
      // Predicated region
      $region29: #{tpu_custom_call.1} parent=5 // pred_check
        _
      $region30: #{tpu_custom_call.1} parent=5 // pred_check_branch
        %208 = sbr.rel (%p205) target = $region32
      $region31: #{tpu_custom_call.1} parent=5 // pred_region
        %s209 = ssub.s32 %s16, 1
        %s210 = sand.u32 %s43, 1
        %s211 = scalar_lea.sflag [#allocation3], %s210
        %s212 = sand.u32 %s43, 1
        %s213 = smul.addr %s212, 32
        %s214 = scalar_lea.vmem [#allocation2], %s213
        // Predicated region
        $region33: #{tpu_custom_call.1} parent=31 // pred_check
          %p215 = pneg %p56
        $region34: #{tpu_custom_call.1} parent=31 // pred_check_branch
          %217 = sbr.rel (%p215) target = $region36
        $region35: #{tpu_custom_call.1} parent=31 // pred_region
          %218 = dma.done %s211, 512
        $region36: #{tpu_custom_call.1} parent=31 // pred_fallthru
          _
        // Predicated region
        $region37: #{tpu_custom_call.1} parent=31 // pred_check
          %p219 = pneg %p77
        $region38: #{tpu_custom_call.1} parent=31 // pred_check_branch
          %221 = sbr.rel (%p219) target = $region40
        $region39: #{tpu_custom_call.1} parent=31 // pred_region
          %222 = dma.done [#allocation6], 2048
        $region40: #{tpu_custom_call.1} parent=31 // pred_fallthru
          _
        // Predicated region
        $region41: #{tpu_custom_call.1} parent=31 // pred_check
          %p223 = pneg %p103
        $region42: #{tpu_custom_call.1} parent=31 // pred_check_branch
          %225 = sbr.rel (%p223) target = $region44
        $region43: #{tpu_custom_call.1} parent=31 // pred_region
          %226 = dma.done [#allocation6], 512
        $region44: #{tpu_custom_call.1} parent=31 // pred_fallthru
          _
        %s227 = sand.u32 %s43, 1
        %s228 = scalar_lea.sflag [#allocation3], %s227
        %s229 = sand.u32 %s43, 1
        %s230 = smul.addr %s229, 32
        %s231 = scalar_lea.vmem [#allocation2], %s230
        %p232 = pneg %p56
        %p233 = pneg %p53
        %p234 = pneg %p77
        %p235 = pneg %p74
        %p236 = pneg %p103
        %p237 = pneg %p100
        %p238 = pneg %p131
        %p239 = pneg %p128
        %s240 = sand.u32 %s118, 1
        %s241 = scalar_lea.sflag [#allocation4], %s240
        %s242 = sand.u32 %s118, 1
        %s243 = smul.addr %s242, 32
        %s244 = scalar_lea.vmem [#allocation8], %s243
        %s245 = smul.u32 4, %s25
        %s246 = smul.u32 4, %s25
        %s247 = smul.u32 4, %s25
        %v249 = vld [vmem:[%s214] sm:$0xff]
        %v250 = vld [vmem:[%s214 + $0x8] sm:$0xff]
        %v251 = vld [vmem:[%s214 + $0x10] sm:$0xff]
        %v252 = vld [vmem:[%s214 + $0x18] sm:$0xff]
        %v253 = vld [vmem:[#allocation5] sm:$0xf]
        %v254 = vld [vmem:[#allocation5 + $0x4] sm:$0xf]
        %v255 = vld [vmem:[#allocation5 + $0x8] sm:$0xf]
        %v256 = vld [vmem:[#allocation5 + $0xc] sm:$0xf]
        %v257 = vld [vmem:[#allocation5 + $0x10] sm:$0xf]
        %v258 = vld [vmem:[#allocation5 + $0x14] sm:$0xf]
        %v259 = vld [vmem:[#allocation5 + $0x18] sm:$0xf]
        %v260 = vld [vmem:[#allocation5 + $0x1c] sm:$0xf]
        %v261 = vld [vmem:[#allocation5 + $0x20] sm:$0xf]
        %v262 = vld [vmem:[#allocation5 + $0x24] sm:$0xf]
        %v263 = vld [vmem:[#allocation5 + $0x28] sm:$0xf]
        %v264 = vld [vmem:[#allocation5 + $0x2c] sm:$0xf]
        %v265 = vld [vmem:[#allocation5 + $0x30] sm:$0xf]
        %v266 = vld [vmem:[#allocation5 + $0x34] sm:$0xf]
        %v267 = vld [vmem:[#allocation5 + $0x38] sm:$0xf]
        %v268 = vld [vmem:[#allocation5 + $0x3c] sm:$0xf]
        %v269 = vld [vmem:[#allocation5 + $0x40] sm:$0xf]
        %v270 = vld [vmem:[#allocation5 + $0x44] sm:$0xf]
        %v271 = vld [vmem:[#allocation5 + $0x48] sm:$0xf]
        %v272 = vld [vmem:[#allocation5 + $0x4c] sm:$0xf]
        %v273 = vld [vmem:[#allocation5 + $0x50] sm:$0xf]
        %v274 = vld [vmem:[#allocation5 + $0x54] sm:$0xf]
        %v275 = vld [vmem:[#allocation5 + $0x58] sm:$0xf]
        %v276 = vld [vmem:[#allocation5 + $0x5c] sm:$0xf]
        %v277 = vld [vmem:[#allocation5 + $0x60] sm:$0xf]
        %v278 = vld [vmem:[#allocation5 + $0x64] sm:$0xf]
        %v279 = vld [vmem:[#allocation5 + $0x68] sm:$0xf]
        %v280 = vld [vmem:[#allocation5 + $0x6c] sm:$0xf]
        %v281 = vld [vmem:[#allocation5 + $0x70] sm:$0xf]
        %v282 = vld [vmem:[#allocation5 + $0x74] sm:$0xf]
        %v283 = vld [vmem:[#allocation5 + $0x78] sm:$0xf]
        %v284 = vld [vmem:[#allocation5 + $0x7c] sm:$0xf]
        %v285 = vld [vmem:[#allocation7] sm:$0xff]
        %v286 = vld [vmem:[#allocation7 + $0x8] sm:$0xff]
        %v287 = vld [vmem:[#allocation7 + $0x10] sm:$0xff]
        %v288 = vld [vmem:[#allocation7 + $0x18] sm:$0xff]
        %v293 = vunpack.c.l.b16 %v249
        %v294 = vunpack.c.h.b16 %v249
        %v295 = vunpack.c.l.b16 %v250
        %v296 = vunpack.c.h.b16 %v250
        %v297 = vunpack.c.l.b16 %v251
        %v298 = vunpack.c.h.b16 %v251
        %v299 = vunpack.c.l.b16 %v252
        %v300 = vunpack.c.h.b16 %v252
        %v301 = vpack.c.b16 %v295, %v293
        %v302 = vpack.c.b16 %v296, %v294
        %v303 = vpack.c.b16 %v299, %v297
        %v304 = vpack.c.b16 %v300, %v298
        %v341 = vunpack.c.l.b16 %v253
        %v342 = vunpack.c.l.b16 %v254
        %v343 = vunpack.c.l.b16 %v255
        %v344 = vunpack.c.l.b16 %v256
        %v345 = vunpack.c.l.b16 %v257
        %v346 = vunpack.c.l.b16 %v258
        %v347 = vunpack.c.l.b16 %v259
        %v348 = vunpack.c.l.b16 %v260
        %v349 = vunpack.c.l.b16 %v261
        %v350 = vunpack.c.l.b16 %v262
        %v351 = vunpack.c.l.b16 %v263
        %v352 = vunpack.c.l.b16 %v264
        %v353 = vunpack.c.l.b16 %v265
        %v354 = vunpack.c.l.b16 %v266
        %v355 = vunpack.c.l.b16 %v267
        %v356 = vunpack.c.l.b16 %v268
        %v357 = vunpack.c.l.b16 %v269
        %v358 = vunpack.c.l.b16 %v270
        %v359 = vunpack.c.l.b16 %v271
        %v360 = vunpack.c.l.b16 %v272
        %v361 = vunpack.c.l.b16 %v273
        %v362 = vunpack.c.l.b16 %v274
        %v363 = vunpack.c.l.b16 %v275
        %v364 = vunpack.c.l.b16 %v276
        %v365 = vunpack.c.l.b16 %v277
        %v366 = vunpack.c.l.b16 %v278
        %v367 = vunpack.c.l.b16 %v279
        %v368 = vunpack.c.l.b16 %v280
        %v369 = vunpack.c.l.b16 %v281
        %v370 = vunpack.c.l.b16 %v282
        %v371 = vunpack.c.l.b16 %v283
        %v372 = vunpack.c.l.b16 %v284
        %v373 = vpack.c.b16 %v342, %v341
        %v374 = vpack.c.b16 %v344, %v343
        %v375 = vpack.c.b16 %v346, %v345
        %v376 = vpack.c.b16 %v348, %v347
        %v377 = vpack.c.b16 %v350, %v349
        %v378 = vpack.c.b16 %v352, %v351
        %v379 = vpack.c.b16 %v354, %v353
        %v380 = vpack.c.b16 %v356, %v355
        %v381 = vpack.c.b16 %v358, %v357
        %v382 = vpack.c.b16 %v360, %v359
        %v383 = vpack.c.b16 %v362, %v361
        %v384 = vpack.c.b16 %v364, %v363
        %v385 = vpack.c.b16 %v366, %v365
        %v386 = vpack.c.b16 %v368, %v367
        %v387 = vpack.c.b16 %v370, %v369
        %v388 = vpack.c.b16 %v372, %v371
        %405 = vmatprep.subr.bf16.mxu0 0
        %406 = vmatpush1.bf16.msra.mxu0 %v373
        %407 = vmatprep.subr.bf16.mxu0 0
        %408 = vmatpush1.bf16.msra.mxu0 %v374
        %409 = vmatprep.subr.bf16.mxu0 0
        %410 = vmatpush1.bf16.msra.mxu0 %v375
        %411 = vmatprep.subr.bf16.mxu0 0
        %412 = vmatpush1.bf16.msra.mxu0 %v376
        %413 = vmatprep.subr.bf16.mxu0 0
        %414 = vmatpush1.bf16.msra.mxu0 %v377
        %415 = vmatprep.subr.bf16.mxu0 0
        %416 = vmatpush1.bf16.msra.mxu0 %v378
        %417 = vmatprep.subr.bf16.mxu0 0
        %418 = vmatpush1.bf16.msra.mxu0 %v379
        %419 = vmatprep.subr.bf16.mxu0 0
        %420 = vmatpush1.bf16.msra.mxu0 %v380
        %421 = vmatprep.subr.bf16.mxu0 0
        %422 = vmatpush1.bf16.msra.mxu0 %v381
        %423 = vmatprep.subr.bf16.mxu0 0
        %424 = vmatpush1.bf16.msra.mxu0 %v382
        %425 = vmatprep.subr.bf16.mxu0 0
        %426 = vmatpush1.bf16.msra.mxu0 %v383
        %427 = vmatprep.subr.bf16.mxu0 0
        %428 = vmatpush1.bf16.msra.mxu0 %v384
        %429 = vmatprep.subr.bf16.mxu0 0
        %430 = vmatpush1.bf16.msra.mxu0 %v385
        %431 = vmatprep.subr.bf16.mxu0 0
        %432 = vmatpush1.bf16.msra.mxu0 %v386
        %433 = vmatprep.subr.bf16.mxu0 0
        %434 = vmatpush1.bf16.msra.mxu0 %v387
        %435 = vmatprep.subr.bf16.mxu0 0
        %436 = vmatpush1.bf16.msra.mxu0 %v388
        %437 = vmatprep.mubr.bf16.mxu0 %v302
        %438 = vmatmul.mubr.bf16.gmra.mrb[0].mxu0 %v301
        %v439 = vpop.f32.mrb[0].mxu0
        %v440 = vadd.f32 %v285, %v439
        %v441 = vpop.f32.mrb[0].mxu0
        %v442 = vpop.f32.mrb[0].mxu0
        %v443 = vadd.f32 %v286, %v442
        %v444 = vpop.f32.mrb[0].mxu0
        %445 = vmatprep.mubr.bf16.mxu0 %v304
        %446 = vmatmul.mubr.bf16.gmra.mrb[0].mxu0 %v303
        %v447 = vpop.f32.mrb[0].mxu0
        %v448 = vadd.f32 %v287, %v447
        %v449 = vpop.f32.mrb[0].mxu0
        %v450 = vpop.f32.mrb[0].mxu0
        %v451 = vadd.f32 %v288, %v450
        %v452 = vpop.f32.mrb[0].mxu0
        %453 = vdwg.mxu0
        %454 = vst [vmem:[%s244] sm:$0xff] %v440
        %455 = vst [vmem:[%s244 + $0x8] sm:$0xff] %v443
        %456 = vst [vmem:[%s244 + $0x10] sm:$0xff] %v448
        %457 = vst [vmem:[%s244 + $0x18] sm:$0xff] %v451
        %s458 = sand.u32 %s118, 1
        %s459 = scalar_lea.sflag [#allocation4], %s458
        %s460 = sand.u32 %s118, 1
        %s461 = smul.addr %s460, 32
        %s462 = scalar_lea.vmem [#allocation8], %s461
        // Predicated region
        $region45: #{tpu_custom_call.1} parent=31 // pred_check
          %p463 = pneg %p128
        $region46: #{tpu_custom_call.1} parent=31 // pred_check_branch
          %465 = sbr.rel (%p463) target = $region48
        $region47: #{tpu_custom_call.1} parent=31 // pred_region
          %s466 = smul.u32 4, %s25
          %s468 = ssub.s32 512, 512
          %469 = vsyncadd %s459, %s468
          %s470 = smul.addr %s26, 4
          %s471 = sadd.s32 %s466, %s470
          %s472 = smul.addr %s471, 128
          %s473 = scalar_lea.hbm %s3, %s472
          %s474 = sshll.u32 %s462, 4
          %s475 = int_to_ptr.vmem [resolvable:$true] %s474
          %480 = dma.vmem_to_hbm [thread:$0]  %s475, 512, %s473, %s459, 128, 128, 8
        $region48: #{tpu_custom_call.1} parent=31 // pred_fallthru
          _
      $region32: #{tpu_custom_call.1} parent=5 // pred_fallthru
        _
      %p481 = scmp.le.s32.totalorder 2, %s16
      // Predicated region
      $region49: #{tpu_custom_call.1} parent=5 // pred_check
        %p482 = pneg %p481
      $region50: #{tpu_custom_call.1} parent=5 // pred_check_branch
        %484 = sbr.rel (%p482) target = $region52
      $region51: #{tpu_custom_call.1} parent=5 // pred_region
        %s485 = ssub.s32 %s16, 2
        // Predicated region
        $region53: #{tpu_custom_call.1} parent=51 // pred_check
          %p486 = pneg %p134
        $region54: #{tpu_custom_call.1} parent=51 // pred_check_branch
          %488 = sbr.rel (%p486) target = $region56
        $region55: #{tpu_custom_call.1} parent=51 // pred_region
          %s489 = sand.u32 %s119, 1
          %s490 = scalar_lea.sflag [#allocation4], %s489
          %s491 = sand.u32 %s119, 1
          %s492 = smul.addr %s491, 32
          %s493 = scalar_lea.vmem [#allocation8], %s492
          %494 = dma.done %s490, 512
        $region56: #{tpu_custom_call.1} parent=51 // pred_fallthru
          _
      $region52: #{tpu_custom_call.1} parent=5 // pred_fallthru
        _
    $region6: #{tpu_custom_call.1} parent=1 // loop_footer
      %s20 = sadd.s32 1, %s16
    $region7: #{tpu_custom_call.1} parent=1 // loop_footer_branch
      %15 = sbr.rel target = $region3
    $region8: #{tpu_custom_call.1} parent=1 // loop_exit
      _
    %495 = vsyncpa [#allocation3], 1
    %s496 = scalar_lea.sflag [#allocation3], 1
    %497 = vsyncpa %s496, 1
    %498 = vsyncpa [#allocation6], 1
    %499 = vsyncpa [#allocation4], 1
    %s500 = scalar_lea.sflag [#allocation4], 1
    %501 = vsyncpa %s500, 1

</llo_original>
